<compile_context>
chip_gen: v5e
topology: v5e:2x2
jax: 0.10.0
libtpu: 0.0.40
codegen_flags: <defaults>
</compile_context>

<pallas_src>
import jax
import jax.numpy as jnp
from jax.experimental import pallas as pl
from jax.experimental.pallas import tpu as pltpu

F1, F2 = 128, 64   # fc1 / fc2 hidden sizes


def mlp_kernel(x_ref, w1_ref, b1_ref, w2_ref, b2_ref, w3_ref, b3_ref, o_ref,
               acc_ref):
    k = pl.program_id(1)

    @pl.when(k == 0)
    def _init():
        acc_ref[...] = jnp.zeros_like(acc_ref)

    # fc1 partial sum over this K slice; x is cast to bf16 on the VPU here
    # (free under the DMA), accumulation stays f32 in VMEM scratch.
    acc_ref[...] += jnp.dot(x_ref[...].astype(jnp.bfloat16), w1_ref[...],
                            preferred_element_type=jnp.float32)

    @pl.when(k == pl.num_programs(1) - 1)
    def _epilogue():
        h1 = jnp.maximum(acc_ref[...] + b1_ref[...], 0.0)            # (TB,128) f32
        h2 = jnp.dot(h1.astype(jnp.bfloat16), w2_ref[...],
                     preferred_element_type=jnp.float32)
        h2 = jnp.maximum(h2 + b2_ref[...], 0.0)                      # (TB, 64) f32
        # fc3 (out_features=1), kept in f32: contract the feature axis of both
        # operands ('oc,bc->ob', like q@k^T) so the result lands as a
        # lane-dense (1, TB) row -> no masked partial stores.
        z = jax.lax.dot_general(w3_ref[...], h2,
                                (((1,), (1,)), ((), ())),
                                preferred_element_type=jnp.float32)  # (1, TB)
        p = jax.nn.sigmoid(z + b3_ref[0])
        o_ref[...] = p.reshape(o_ref.shape)


def _round_up(x, m):
    return ((x + m - 1) // m) * m


def _pick_block_b(batch, max_tb=1024):
    # Largest 128-multiple tile, capped, that keeps >= 2 grid blocks when the
    # batch allows it (so v7x's second TensorCore is used via "parallel").
    half = _round_up(max(1, -(-batch // 2)), 128)
    return int(max(128, min(max_tb, half)))


def _pick_block_k(d, max_tk=1024):
    return int(min(max_tk, _round_up(d, 128)))


def _vmem_limit_bytes(tb, tk, x_itemsize):
    est = (
        2 * tb * tk * x_itemsize          # x tile, double-buffered
        + 2 * tk * F1 * 2                 # w1 bf16 tile, double-buffered
        + 2 * tb * 4                      # output row, double-buffered
        + tb * F1 * 4                     # h1 f32 accumulator scratch
        + 2 * (F1 * F2 * 2 + F1 * 4 + F2 * 4 + F2 * 4)  # resident fc2/biases/w3
    )
    # generous headroom, capped to v7x's 64 MiB physical VMEM
    return int(min(64 << 20, max(16 << 20, 2 * est)))


def suicidal_classifier_forward(x, params, *, block_b=None, block_k=None):
    """x: [B, input_dim] (f32 or bf16). params: dict(w1,b1,w2,b2,w3,b3). Returns [B,1] f32."""
    w1, b1, w2, b2, w3, b3 = (params[k] for k in ("w1", "b1", "w2", "b2", "w3", "b3"))
    B, D = x.shape
    TB = block_b if block_b is not None else _pick_block_b(B)
    TK = block_k if block_k is not None else _pick_block_k(D)

    n_b = pl.cdiv(B, TB)
    n_k = pl.cdiv(D, TK)
    B_pad, D_pad = n_b * TB, n_k * TK

    # Zero-pad batch/feature dims to tile multiples: padded rows give finite
    # (discarded) probabilities, padded K columns contribute 0 to the matmul.
    if B_pad != B or D_pad != D:
        x = jnp.pad(x, ((0, B_pad - B), (0, D_pad - D)))
    if D_pad != D:
        w1 = jnp.pad(w1, ((0, D_pad - D), (0, 0)))

    w1_bf = w1.astype(jnp.bfloat16)   # MXU operands in bf16
    w2_bf = w2.astype(jnp.bfloat16)
    b3_s = b3.reshape((1,)).astype(jnp.float32)   # scalar for SMEM

    out = pl.pallas_call(
        mlp_kernel,
        out_shape=jax.ShapeDtypeStruct((n_b, 1, TB), jnp.float32),
        grid=(n_b, n_k),
        in_specs=[
            pl.BlockSpec((TB, TK), lambda i, k: (i, k)),        # x (orig dtype), tiled
            pl.BlockSpec((TK, F1), lambda i, k: (k, 0)),        # w1 bf16, K-tiled
            pl.BlockSpec((1, F1), lambda i, k: (0, 0)),         # b1 f32, resident
            pl.BlockSpec((F1, F2), lambda i, k: (0, 0)),        # w2 bf16, resident
            pl.BlockSpec((1, F2), lambda i, k: (0, 0)),         # b2 f32, resident
            pl.BlockSpec((1, F2), lambda i, k: (0, 0)),         # w3 f32, resident
            pl.BlockSpec(memory_space=pltpu.MemorySpace.SMEM),  # b3 scalar
        ],
        out_specs=pl.BlockSpec((1, 1, TB), lambda i, k: (i, 0, 0)),
        scratch_shapes=[pltpu.VMEM((TB, F1), jnp.float32)],
        compiler_params=pltpu.CompilerParams(
            dimension_semantics=("parallel", "arbitrary"),
            vmem_limit_bytes=_vmem_limit_bytes(TB, TK, x.dtype.itemsize),
        ),
    )(x, w1_bf, b1, w2_bf, b2, w3, b3_s)

    return out.reshape(-1)[:B].reshape(B, 1)


def init_params(key, input_dim):
    """Deterministic init mimicking nn.Linear default (U(-1/sqrt(fan_in), +1/sqrt(fan_in)))."""
    ks = jax.random.split(key, 6)

    def linear(kw, kb, fan_in, fan_out):
        bound = 1.0 / jnp.sqrt(fan_in)
        w = jax.random.uniform(kw, (fan_in, fan_out), jnp.float32, -bound, bound)
        b = jax.random.uniform(kb, (1, fan_out), jnp.float32, -bound, bound)
        return w, b

    w1, b1 = linear(ks[0], ks[1], input_dim, F1)
    w2, b2 = linear(ks[2], ks[3], F1, F2)
    w3_col, b3 = linear(ks[4], ks[5], F2, 1)
    return dict(w1=w1, b1=b1, w2=w2, b2=b2,
                w3=w3_col.T,            # (1, 64) row for the fc3 head
                b3=b3.reshape(-1))      # (1,) scalar


def reference_forward(x, p):
    h1 = jnp.maximum(x @ p["w1"] + p["b1"], 0.0)
    h2 = jnp.maximum(h1 @ p["w2"] + p["b2"], 0.0)
    z = h2 @ p["w3"].T + p["b3"]
    return jax.nn.sigmoid(z)


if __name__ == "__main__":
    key = jax.random.PRNGKey(0)
    k_x, k_p = jax.random.split(key)

    batch = 200        # exercises batch padding (-> 256) and a 2-block batch grid
    input_dim = 256    # stands in for the TF-IDF vocabulary size

    x = jax.random.normal(k_x, (batch, input_dim), jnp.float32)
    params = init_params(k_p, input_dim)
    ref = reference_forward(x, params)

    # 1) default adaptive tiling (TB=128 -> two "parallel" batch blocks, one K step)
    out = jax.block_until_ready(suicidal_classifier_forward(x, params))
    assert out.shape == (batch, 1)
    assert jnp.allclose(out, ref, atol=2e-2), (
        f"default tiling mismatch, max abs diff = {jnp.max(jnp.abs(out - ref))}"
    )

    # 2) explicit small K tile to exercise the K-axis accumulator path (n_k = 2)
    out2 = jax.block_until_ready(
        suicidal_classifier_forward(x, params, block_b=128, block_k=128))
    assert jnp.allclose(out2, ref, atol=2e-2), (
        f"K-tiled mismatch, max abs diff = {jnp.max(jnp.abs(out2 - ref))}"
    )

    print("KERNEL_OK")
</pallas_src>

<mosaic_0001>
module attributes {stable_mosaic.version = 11 : i64} {
  func.func @mlp_kernel(%arg0: i32, %arg1: i32, %arg2: memref<128x256xf32, #tpu.memory_space<vmem>>, %arg3: memref<256x128xbf16, #tpu.memory_space<vmem>>, %arg4: memref<1x128xf32, #tpu.memory_space<vmem>>, %arg5: memref<128x64xbf16, #tpu.memory_space<vmem>>, %arg6: memref<1x64xf32, #tpu.memory_space<vmem>>, %arg7: memref<1x64xf32, #tpu.memory_space<vmem>>, %arg8: memref<1xf32, #tpu.memory_space<smem>>, %arg9: memref<1x1x128xf32, #tpu.memory_space<vmem>>, %arg10: memref<128x128xf32, #tpu.memory_space<vmem>>) attributes {dimension_semantics = [#tpu.dimension_semantics<parallel>, #tpu.dimension_semantics<arbitrary>], iteration_bounds = array<i64: 2, 1>, scalar_prefetch = 0 : i64, scratch_operands = 1 : i64, tpu.core_type = #tpu.core_type<tc>, window_params = [{transform_indices = @transform_0, window_bounds = array<i64: 128, 256>}, {transform_indices = @transform_1, window_bounds = array<i64: 256, 128>}, {pipeline_mode = #tpu.pipeline_mode<synchronous>, transform_indices = @transform_2, window_bounds = array<i64: 1, 128>}, {pipeline_mode = #tpu.pipeline_mode<synchronous>, transform_indices = @transform_3, window_bounds = array<i64: 128, 64>}, {pipeline_mode = #tpu.pipeline_mode<synchronous>, transform_indices = @transform_4, window_bounds = array<i64: 1, 64>}, {pipeline_mode = #tpu.pipeline_mode<synchronous>, transform_indices = @transform_5, window_bounds = array<i64: 1, 64>}, {transform_indices = @transform_6, window_bounds = array<i64: 1>}, {transform_indices = @transform_7, window_bounds = array<i64: 1, 1, 128>}]} {
    %c0_i32 = arith.constant 0 : i32
    %0 = arith.cmpi eq, %arg1, %c0_i32 : i32
    %1 = arith.extui %0 : i1 to i32
    %c0_i32_0 = arith.constant 0 : i32
    %2 = arith.cmpi ne, %1, %c0_i32_0 : i32
    scf.if %2 {
      %cst_10 = arith.constant 0.000000e+00 : f32
      %13 = vector.broadcast %cst_10 : f32 to vector<128x128xf32>
      %c0_11 = arith.constant 0 : index
      %c0_12 = arith.constant 0 : index
      %14 = vector.load %arg10[%c0_11, %c0_12] : memref<128x128xf32, #tpu.memory_space<vmem>>, vector<128x128xf32>
      tpu.vector_store %arg10[%c0_11, %c0_12], %13 {strides = array<i32>} : memref<128x128xf32, #tpu.memory_space<vmem>>, vector<128x128xf32>,
    } else {
    }
    %c0 = arith.constant 0 : index
    %c0_1 = arith.constant 0 : index
    %3 = vector.load %arg10[%c0, %c0_1] : memref<128x128xf32, #tpu.memory_space<vmem>>, vector<128x128xf32>
    %c0_2 = arith.constant 0 : index
    %c0_3 = arith.constant 0 : index
    %4 = vector.load %arg2[%c0_2, %c0_3] : memref<128x256xf32, #tpu.memory_space<vmem>>, vector<128x256xf32>
    %5 = arith.truncf %4 : vector<128x256xf32> to vector<128x256xbf16>
    %c0_4 = arith.constant 0 : index
    %c0_5 = arith.constant 0 : index
    %6 = vector.load %arg3[%c0_4, %c0_5] : memref<256x128xbf16, #tpu.memory_space<vmem>>, vector<256x128xbf16>
    %cst = arith.constant dense<0.000000e+00> : vector<128x128xf32>
    %7 = tpu.matmul %5, %6, %cst {dimension_numbers = #tpu.dot_dimension_numbers<[1], [0], [0], [1], [0, 0, 1, 1], [], []>} : vector<128x256xbf16>, vector<256x128xbf16>, vector<128x128xf32> -> vector<128x128xf32>
    %8 = arith.addf %3, %7 : vector<128x128xf32>
    %c0_6 = arith.constant 0 : index
    %c0_7 = arith.constant 0 : index
    %9 = vector.load %arg10[%c0_6, %c0_7] : memref<128x128xf32, #tpu.memory_space<vmem>>, vector<128x128xf32>
    tpu.vector_store %arg10[%c0_6, %c0_7], %8 {strides = array<i32>} : memref<128x128xf32, #tpu.memory_space<vmem>>, vector<128x128xf32>,
    %c0_i32_8 = arith.constant 0 : i32
    %10 = arith.cmpi eq, %arg1, %c0_i32_8 : i32
    %11 = arith.extui %10 : i1 to i32
    %c0_i32_9 = arith.constant 0 : i32
    %12 = arith.cmpi ne, %11, %c0_i32_9 : i32
    scf.if %12 {
      %c0_10 = arith.constant 0 : index
      %c0_11 = arith.constant 0 : index
      %13 = vector.load %arg10[%c0_10, %c0_11] : memref<128x128xf32, #tpu.memory_space<vmem>>, vector<128x128xf32>
      %c0_12 = arith.constant 0 : index
      %c0_13 = arith.constant 0 : index
      %14 = vector.load %arg4[%c0_12, %c0_13] : memref<1x128xf32, #tpu.memory_space<vmem>>, vector<1x128xf32>
      %15 = vector.broadcast %14 : vector<1x128xf32> to vector<128x128xf32>
      %16 = arith.addf %13, %15 : vector<128x128xf32>
      %cst_14 = arith.constant 0.000000e+00 : f32
      %17 = vector.broadcast %cst_14 : f32 to vector<128x128xf32>
      %18 = arith.maximumf %16, %17 : vector<128x128xf32>
      %19 = arith.truncf %18 : vector<128x128xf32> to vector<128x128xbf16>
      %c0_15 = arith.constant 0 : index
      %c0_16 = arith.constant 0 : index
      %20 = vector.load %arg5[%c0_15, %c0_16] : memref<128x64xbf16, #tpu.memory_space<vmem>>, vector<128x64xbf16>
      %cst_17 = arith.constant dense<0.000000e+00> : vector<128x64xf32>
      %21 = tpu.matmul %19, %20, %cst_17 {dimension_numbers = #tpu.dot_dimension_numbers<[1], [0], [0], [1], [0, 0, 1, 1], [], []>} : vector<128x128xbf16>, vector<128x64xbf16>, vector<128x64xf32> -> vector<128x64xf32>
      %c0_18 = arith.constant 0 : index
      %c0_19 = arith.constant 0 : index
      %22 = vector.load %arg6[%c0_18, %c0_19] : memref<1x64xf32, #tpu.memory_space<vmem>>, vector<1x64xf32>
      %23 = vector.broadcast %22 : vector<1x64xf32> to vector<128x64xf32>
      %24 = arith.addf %21, %23 : vector<128x64xf32>
      %cst_20 = arith.constant 0.000000e+00 : f32
      %25 = vector.broadcast %cst_20 : f32 to vector<128x64xf32>
      %26 = arith.maximumf %24, %25 : vector<128x64xf32>
      %c0_21 = arith.constant 0 : index
      %c0_22 = arith.constant 0 : index
      %27 = vector.load %arg7[%c0_21, %c0_22] : memref<1x64xf32, #tpu.memory_space<vmem>>, vector<1x64xf32>
      %cst_23 = arith.constant dense<0.000000e+00> : vector<1x128xf32>
      %28 = tpu.matmul %27, %26, %cst_23 {dimension_numbers = #tpu.dot_dimension_numbers<[1], [1], [0], [0], [0, 0, 1, 0], [], []>} : vector<1x64xf32>, vector<128x64xf32>, vector<1x128xf32> -> vector<1x128xf32>
      %c0_24 = arith.constant 0 : index
      %29 = memref.load %arg8[%c0_24] : memref<1xf32, #tpu.memory_space<smem>>
      %30 = vector.broadcast %29 : f32 to vector<1x128xf32>
      %31 = arith.addf %28, %30 : vector<1x128xf32>
      %32 = arith.negf %31 : vector<1x128xf32>
      %33 = math.exp %32 : vector<1x128xf32>
      %cst_25 = arith.constant 1.000000e+00 : f32
      %34 = vector.broadcast %cst_25 : f32 to vector<1x128xf32>
      %35 = arith.addf %34, %33 : vector<1x128xf32>
      %36 = arith.divf %34, %35 : vector<1x128xf32>
      %37 = vector.shape_cast %36 : vector<1x128xf32> to vector<1x1x128xf32>
      %c0_26 = arith.constant 0 : index
      %c0_27 = arith.constant 0 : index
      %c0_28 = arith.constant 0 : index
      %38 = vector.load %arg9[%c0_26, %c0_27, %c0_28] : memref<1x1x128xf32, #tpu.memory_space<vmem>>, vector<1x1x128xf32>
      tpu.vector_store %arg9[%c0_26, %c0_27, %c0_28], %37 {strides = array<i32>} : memref<1x1x128xf32, #tpu.memory_space<vmem>>, vector<1x1x128xf32>,
    } else {
    }
    return
  }
  func.func @transform_0(%arg0: i32, %arg1: i32) -> (i32, i32) {
    %c0_i32 = arith.constant 0 : i32
    return %arg0, %arg1 : i32, i32
  }
  func.func @transform_1(%arg0: i32, %arg1: i32) -> (i32, i32) {
    %c0_i32 = arith.constant 0 : i32
    %c0_i32_0 = arith.constant 0 : i32
    return %arg1, %c0_i32 : i32, i32
  }
  func.func @transform_2(%arg0: i32, %arg1: i32) -> (i32, i32) {
    %c0_i32 = arith.constant 0 : i32
    %c0_i32_0 = arith.constant 0 : i32
    %c0_i32_1 = arith.constant 0 : i32
    return %c0_i32, %c0_i32_0 : i32, i32
  }
  func.func @transform_3(%arg0: i32, %arg1: i32) -> (i32, i32) {
    %c0_i32 = arith.constant 0 : i32
    %c0_i32_0 = arith.constant 0 : i32
    %c0_i32_1 = arith.constant 0 : i32
    return %c0_i32, %c0_i32_0 : i32, i32
  }
  func.func @transform_4(%arg0: i32, %arg1: i32) -> (i32, i32) {
    %c0_i32 = arith.constant 0 : i32
    %c0_i32_0 = arith.constant 0 : i32
    %c0_i32_1 = arith.constant 0 : i32
    return %c0_i32, %c0_i32_0 : i32, i32
  }
  func.func @transform_5(%arg0: i32, %arg1: i32) -> (i32, i32) {
    %c0_i32 = arith.constant 0 : i32
    %c0_i32_0 = arith.constant 0 : i32
    %c0_i32_1 = arith.constant 0 : i32
    return %c0_i32, %c0_i32_0 : i32, i32
  }
  func.func @transform_6(%arg0: i32, %arg1: i32) -> i32 {
    %c0_i32 = arith.constant 0 : i32
    %c0_i32_0 = arith.constant 0 : i32
    return %c0_i32 : i32
  }
  func.func @transform_7(%arg0: i32, %arg1: i32) -> (i32, i32, i32) {
    %c0_i32 = arith.constant 0 : i32
    %c0_i32_0 = arith.constant 0 : i32
    %c0_i32_1 = arith.constant 0 : i32
    return %arg0, %c0_i32, %c0_i32_0 : i32, i32, i32
  }
}

</mosaic_0001>

<llo_original>
// kernel: tpu_custom_call.1
$region0: #{tpu_custom_call.1}
  #allocation0 [shape = 'u32[]', space=smem, size = 0x4, offset = 0x4, fixed_abs, tag = 'smem constant byte address 0x4 - core index']
  #allocation1 [shape = 'u32[72,128]{1,0:T(1,128)}', space=vmem, size = 0x9000, scoped, tag = 'internal scratch']
  #allocation2 [shape = 'f32[128,128]{1,0:T(8,128)}', space=vmem, size = 0x10000, scoped, tag = 'scratch operand']
  #allocation3 [shape = 'f32[1]{0:T(128)S(6)}', space=smem, size = 0x200, scoped, tag = 'scoped memory for tpu_custom_call.1']
  %s0 = inlined_call_operand.hbm [shape: f32[256,256], index: 0, kind: input, shape index: {}]
  %s1 = inlined_call_operand.hbm [shape: bf16[256,128], index: 1, kind: input, shape index: {}]
  %s2 = inlined_call_operand.vmem [shape: f32[1,128], index: 2, kind: input, shape index: {}]
  %s3 = inlined_call_operand.vmem [shape: bf16[128,64], index: 3, kind: input, shape index: {}]
  %s4 = inlined_call_operand.vmem [shape: f32[1,64], index: 4, kind: input, shape index: {}]
  %s5 = inlined_call_operand.vmem [shape: f32[1,64], index: 5, kind: input, shape index: {}]
  %s6 = inlined_call_operand.<no memory space> [shape: f32[1], index: 6, kind: input, shape index: {}]
  %s7 = inlined_call_operand.hbm [shape: f32[2,1,128], index: 7, kind: output, shape index: {}]
  %s8 = sld [smem:[#allocation0]]
  $region77: #{tpu_custom_call.1} parent=0
    _
  %s10 = ssub.s32 1, %s8
  %s11 = scalar_select 0, %s10, %s8
  %12 = sst [smem:[#allocation3]] %s6
  $region1: #{tpu_custom_call.1} parent=0
    #allocation4 [shape = 'u8[262144]{0}', space=vmem, size = 0x40000, scoped, tag = 'input window, operand 0']
    #allocation5 [shape = 's32[2]{0}', space=sflag, size = 0x8, scoped, tag = 'scoped memory for tpu_custom_call.1']
    #allocation6 [shape = 's32[2]{0}', space=sflag, size = 0x8, scoped, tag = 'scoped memory for tpu_custom_call.1']
    #allocation7 [shape = 'u8[65536]{0}', space=vmem, size = 0x10000, scoped, tag = 'input window, operand 1, single buffered']
    #allocation8 [shape = 's32[1]{0}', space=sflag, size = 0x4, scoped, tag = 'scoped memory for tpu_custom_call.1']
    #allocation9 [shape = 'u8[1024]{0}', space=vmem, size = 0x400, scoped, tag = 'output window, operand 0']
    %13 = vsyncpa [#allocation5], 0
    %s14 = scalar_lea.sflag [#allocation5], 1
    %15 = vsyncpa %s14, 0
    %16 = vsyncpa [#allocation8], 0
    %17 = vsyncpa [#allocation6], 0
    %s18 = scalar_lea.sflag [#allocation6], 1
    %19 = vsyncpa %s18, 0
    loop: start=0, step=1, limit=4
    $region2: #{tpu_custom_call.1} parent=1 // loop_pre_header
      _
    $region3: #{tpu_custom_call.1} parent=1 // loop_header
      %s21 = sphi 0, %s25
      %p22 = scmp.ge.s32.totalorder %s21, 4
      %s28 = sphi 0, %s40
      %s29 = sphi 0, %s36
      %s30 = sphi 0, %s28
      %s31 = sphi 0, %s29
      %s32 = sphi 0, %s30
      %s33 = sphi 0, %s31
      %s45 = sphi 0, %s47
      %s48 = sphi 0, %s45
      %s49 = sphi 0, %s48
      %s65 = sphi 0, %s49
      %s71 = sphi 0, %s73
      %s74 = sphi 0, %s71
      %s75 = sphi 0, %s74
      %s91 = sphi 0, %s75
      %s95 = sphi 0, %s95
      %s97 = sphi 0, %s95
      %s98 = sphi 0, %s97
      %s112 = sphi 0, %s98
      %s116 = sphi 0, %s116
      %s118 = sphi 0, %s116
      %s119 = sphi 0, %s118
      %s133 = sphi 0, %s119
      %s137 = sphi 0, %s137
      %s139 = sphi 0, %s137
      %s140 = sphi 0, %s139
      %s154 = sphi 0, %s140
      %s158 = sphi 0, %s158
      %s160 = sphi 0, %s158
      %s161 = sphi 0, %s160
      %s175 = sphi 0, %s161
      %s179 = sphi 0, %s179
      %s181 = sphi 0, %s179
      %s182 = sphi 0, %s181
      %s196 = sphi 0, %s182
      %s202 = sphi 0, %s204
      %s205 = sphi 0, %s202
      %s206 = sphi 0, %s205
      %s222 = sphi 0, %s206
    $region4: #{tpu_custom_call.1} parent=1 // loop_header_branch
      %24 = sbr.rel (%p22) target = $region8
    $region5: #{tpu_custom_call.1} parent=1 // loop_body
      %s26 = ssub.s32 %s21, 1
      %s27 = ssub.s32 %s21, 2
      %s34 = sadd.s32 1, %s29
      %p35 = scmp.ge.s32.totalorder %s34, 1
      %s36 = scalar_select %p35, 0, %s34
      %s37 = sadd.s32 1, %s28
      %s38 = scalar_select %p35, %s37, %s28
      %p39 = scmp.ge.s32.totalorder %s38, 2
      %s40 = scalar_select %p39, 0, %s38
      %s41 = ssub.s32 %s28, %s40
      %s42 = ssub.s32 %s29, %s36
      %s43 = sor.u32 %s41, %s42
      %p44 = scmp.eq.s32.totalorder %s43, 0
      %s46 = sadd.s32 %s45, 1
      %s47 = scalar_select %p44, %s45, %s46
      %p50 = pneg %p44
      %p51 = scmp.eq.s32.totalorder %s21, 1
      %p52 = por %p50, %p51
      %p53 = scmp.ne.s32.totalorder %s45, %s48
      %p54 = scmp.eq.s32.totalorder %s21, 0
      %p55 = por %p53, %p54
      %p56 = scmp.ne.s32.totalorder %s45, %s48
      %p57 = scmp.eq.s32.totalorder %s26, 1
      %p58 = por %p56, %p57
      %p59 = scmp.ne.s32.totalorder %s48, %s49
      %p60 = scmp.eq.s32.totalorder %s26, 0
      %p61 = por %p59, %p60
      %p62 = scmp.ne.s32.totalorder %s48, %s49
      %p63 = scmp.eq.s32.totalorder %s27, 1
      %p64 = por %p62, %p63
      %p66 = scmp.ne.s32.totalorder %s49, %s65
      %p67 = scmp.eq.s32.totalorder %s27, 0
      %p68 = por %p66, %p67
      %s69 = ssub.s32 %s29, %s36
      %p70 = scmp.eq.s32.totalorder %s69, 0
      %s72 = sadd.s32 %s71, 1
      %s73 = scalar_select %p70, %s71, %s72
      %p76 = pneg %p70
      %p77 = scmp.eq.s32.totalorder %s21, 1
      %p78 = por %p76, %p77
      %p79 = scmp.ne.s32.totalorder %s71, %s74
      %p80 = scmp.eq.s32.totalorder %s21, 0
      %p81 = por %p79, %p80
      %p82 = scmp.ne.s32.totalorder %s71, %s74
      %p83 = scmp.eq.s32.totalorder %s26, 1
      %p84 = por %p82, %p83
      %p85 = scmp.ne.s32.totalorder %s74, %s75
      %p86 = scmp.eq.s32.totalorder %s26, 0
      %p87 = por %p85, %p86
      %p88 = scmp.ne.s32.totalorder %s74, %s75
      %p89 = scmp.eq.s32.totalorder %s27, 1
      %p90 = por %p88, %p89
      %p92 = scmp.ne.s32.totalorder %s75, %s91
      %p93 = scmp.eq.s32.totalorder %s27, 0
      %p94 = por %p92, %p93
      %s96 = sadd.s32 %s95, 1
      %p99 = scmp.eq.s32.totalorder %s21, 1
      %p100 = scmp.ne.s32.totalorder %s95, %s97
      %p101 = scmp.eq.s32.totalorder %s21, 0
      %p102 = por %p100, %p101
      %p103 = scmp.ne.s32.totalorder %s95, %s97
      %p104 = scmp.eq.s32.totalorder %s26, 1
      %p105 = por %p103, %p104
      %p106 = scmp.ne.s32.totalorder %s97, %s98
      %p107 = scmp.eq.s32.totalorder %s26, 0
      %p108 = por %p106, %p107
      %p109 = scmp.ne.s32.totalorder %s97, %s98
      %p110 = scmp.eq.s32.totalorder %s27, 1
      %p111 = por %p109, %p110
      %p113 = scmp.ne.s32.totalorder %s98, %s112
      %p114 = scmp.eq.s32.totalorder %s27, 0
      %p115 = por %p113, %p114
      %s117 = sadd.s32 %s116, 1
      %p120 = scmp.eq.s32.totalorder %s21, 1
      %p121 = scmp.ne.s32.totalorder %s116, %s118
      %p122 = scmp.eq.s32.totalorder %s21, 0
      %p123 = por %p121, %p122
      %p124 = scmp.ne.s32.totalorder %s116, %s118
      %p125 = scmp.eq.s32.totalorder %s26, 1
      %p126 = por %p124, %p125
      %p127 = scmp.ne.s32.totalorder %s118, %s119
      %p128 = scmp.eq.s32.totalorder %s26, 0
      %p129 = por %p127, %p128
      %p130 = scmp.ne.s32.totalorder %s118, %s119
      %p131 = scmp.eq.s32.totalorder %s27, 1
      %p132 = por %p130, %p131
      %p134 = scmp.ne.s32.totalorder %s119, %s133
      %p135 = scmp.eq.s32.totalorder %s27, 0
      %p136 = por %p134, %p135
      %s138 = sadd.s32 %s137, 1
      %p141 = scmp.eq.s32.totalorder %s21, 1
      %p142 = scmp.ne.s32.totalorder %s137, %s139
      %p143 = scmp.eq.s32.totalorder %s21, 0
      %p144 = por %p142, %p143
      %p145 = scmp.ne.s32.totalorder %s137, %s139
      %p146 = scmp.eq.s32.totalorder %s26, 1
      %p147 = por %p145, %p146
      %p148 = scmp.ne.s32.totalorder %s139, %s140
      %p149 = scmp.eq.s32.totalorder %s26, 0
      %p150 = por %p148, %p149
      %p151 = scmp.ne.s32.totalorder %s139, %s140
      %p152 = scmp.eq.s32.totalorder %s27, 1
      %p153 = por %p151, %p152
      %p155 = scmp.ne.s32.totalorder %s140, %s154
      %p156 = scmp.eq.s32.totalorder %s27, 0
      %p157 = por %p155, %p156
      %s159 = sadd.s32 %s158, 1
      %p162 = scmp.eq.s32.totalorder %s21, 1
      %p163 = scmp.ne.s32.totalorder %s158, %s160
      %p164 = scmp.eq.s32.totalorder %s21, 0
      %p165 = por %p163, %p164
      %p166 = scmp.ne.s32.totalorder %s158, %s160
      %p167 = scmp.eq.s32.totalorder %s26, 1
      %p168 = por %p166, %p167
      %p169 = scmp.ne.s32.totalorder %s160, %s161
      %p170 = scmp.eq.s32.totalorder %s26, 0
      %p171 = por %p169, %p170
      %p172 = scmp.ne.s32.totalorder %s160, %s161
      %p173 = scmp.eq.s32.totalorder %s27, 1
      %p174 = por %p172, %p173
      %p176 = scmp.ne.s32.totalorder %s161, %s175
      %p177 = scmp.eq.s32.totalorder %s27, 0
      %p178 = por %p176, %p177
      %s180 = sadd.s32 %s179, 1
      %p183 = scmp.eq.s32.totalorder %s21, 1
      %p184 = scmp.ne.s32.totalorder %s179, %s181
      %p185 = scmp.eq.s32.totalorder %s21, 0
      %p186 = por %p184, %p185
      %p187 = scmp.ne.s32.totalorder %s179, %s181
      %p188 = scmp.eq.s32.totalorder %s26, 1
      %p189 = por %p187, %p188
      %p190 = scmp.ne.s32.totalorder %s181, %s182
      %p191 = scmp.eq.s32.totalorder %s26, 0
      %p192 = por %p190, %p191
      %p193 = scmp.ne.s32.totalorder %s181, %s182
      %p194 = scmp.eq.s32.totalorder %s27, 1
      %p195 = por %p193, %p194
      %p197 = scmp.ne.s32.totalorder %s182, %s196
      %p198 = scmp.eq.s32.totalorder %s27, 0
      %p199 = por %p197, %p198
      %s200 = ssub.s32 %s28, %s40
      %p201 = scmp.eq.s32.totalorder %s200, 0
      %s203 = sadd.s32 %s202, 1
      %s204 = scalar_select %p201, %s202, %s203
      %p207 = pneg %p201
      %p208 = scmp.eq.s32.totalorder %s21, 1
      %p209 = por %p207, %p208
      %p210 = scmp.ne.s32.totalorder %s202, %s205
      %p211 = scmp.eq.s32.totalorder %s21, 0
      %p212 = por %p210, %p211
      %p213 = scmp.ne.s32.totalorder %s202, %s205
      %p214 = scmp.eq.s32.totalorder %s26, 1
      %p215 = por %p213, %p214
      %p216 = scmp.ne.s32.totalorder %s205, %s206
      %p217 = scmp.eq.s32.totalorder %s26, 0
      %p218 = por %p216, %p217
      %p219 = scmp.ne.s32.totalorder %s205, %s206
      %p220 = scmp.eq.s32.totalorder %s27, 1
      %p221 = por %p219, %p220
      %p223 = scmp.ne.s32.totalorder %s206, %s222
      %p224 = scmp.eq.s32.totalorder %s27, 0
      %p225 = por %p223, %p224
      %p226 = scmp.le.s32.totalorder 1, %s21
      %p227 = scmp.lt.s32.totalorder %s21, 3
      %p228 = pnand %p226, %p227
      %p229 = pneg %p228
      // Predicated region
      $region9: #{tpu_custom_call.1} parent=5 // pred_check
        _
      $region10: #{tpu_custom_call.1} parent=5 // pred_check_branch
        %231 = sbr.rel (%p228) target = $region12
      $region11: #{tpu_custom_call.1} parent=5 // pred_region
        %s232 = ssub.s32 %s21, 1
        // Predicated region
        $region13: #{tpu_custom_call.1} parent=11 // pred_check
          %p233 = pneg %p87
        $region14: #{tpu_custom_call.1} parent=11 // pred_check_branch
          %235 = sbr.rel (%p233) target = $region16
        $region15: #{tpu_custom_call.1} parent=11 // pred_region
          %s236 = smul.u32 32, %s31
          %238 = vsyncadd [#allocation8], 0
          %s239 = smul.addr %s236, 4
          %s240 = scalar_lea.hbm %s1, %s239
          %s241 = sshll.u32 %s240, 4
          %s242 = int_to_ptr.hbm [resolvable:$true] %s241
          %s243 = sshll.u32 [#allocation7], 4
          %s244 = int_to_ptr.vmem [resolvable:$true] %s243
          %249 = dma.hbm_to_vmem [thread:$0]  %s242, 2048, %s244, [#allocation8], 64, 64, 4
        $region16: #{tpu_custom_call.1} parent=11 // pred_fallthru
          _
        // Predicated region
        $region17: #{tpu_custom_call.1} parent=11 // pred_check
          %p250 = pneg %p108
        $region18: #{tpu_custom_call.1} parent=11 // pred_check_branch
          %252 = sbr.rel (%p250) target = $region20
        $region19: #{tpu_custom_call.1} parent=11 // pred_region
          _
        $region20: #{tpu_custom_call.1} parent=11 // pred_fallthru
          _
        // Predicated region
        $region21: #{tpu_custom_call.1} parent=11 // pred_check
          %p253 = pneg %p129
        $region22: #{tpu_custom_call.1} parent=11 // pred_check_branch
          %255 = sbr.rel (%p253) target = $region24
        $region23: #{tpu_custom_call.1} parent=11 // pred_region
          _
        $region24: #{tpu_custom_call.1} parent=11 // pred_fallthru
          _
        // Predicated region
        $region25: #{tpu_custom_call.1} parent=11 // pred_check
          %p256 = pneg %p150
        $region26: #{tpu_custom_call.1} parent=11 // pred_check_branch
          %258 = sbr.rel (%p256) target = $region28
        $region27: #{tpu_custom_call.1} parent=11 // pred_region
          _
        $region28: #{tpu_custom_call.1} parent=11 // pred_fallthru
          _
        // Predicated region
        $region29: #{tpu_custom_call.1} parent=11 // pred_check
          %p259 = pneg %p171
        $region30: #{tpu_custom_call.1} parent=11 // pred_check_branch
          %261 = sbr.rel (%p259) target = $region32
        $region31: #{tpu_custom_call.1} parent=11 // pred_region
          _
        $region32: #{tpu_custom_call.1} parent=11 // pred_fallthru
          _
        // Predicated region
        $region33: #{tpu_custom_call.1} parent=11 // pred_check
          %p262 = pneg %p192
        $region34: #{tpu_custom_call.1} parent=11 // pred_check_branch
          %264 = sbr.rel (%p262) target = $region36
        $region35: #{tpu_custom_call.1} parent=11 // pred_region
          _
        $region36: #{tpu_custom_call.1} parent=11 // pred_fallthru
          _
      $region12: #{tpu_custom_call.1} parent=5 // pred_fallthru
        _
      %p265 = scmp.lt.s32.totalorder %s21, 2
      // Predicated region
      $region37: #{tpu_custom_call.1} parent=5 // pred_check
        %p266 = pneg %p265
      $region38: #{tpu_custom_call.1} parent=5 // pred_check_branch
        %268 = sbr.rel (%p266) target = $region40
      $region39: #{tpu_custom_call.1} parent=5 // pred_region
        // Predicated region
        $region41: #{tpu_custom_call.1} parent=39 // pred_check
          %p269 = pneg %p55
        $region42: #{tpu_custom_call.1} parent=39 // pred_check_branch
          %271 = sbr.rel (%p269) target = $region44
        $region43: #{tpu_custom_call.1} parent=39 // pred_region
          %s272 = sand.u32 %s45, 1
          %s273 = scalar_lea.sflag [#allocation5], %s272
          %s274 = sand.u32 %s45, 1
          %s275 = smul.addr %s274, 256
          %s276 = scalar_lea.vmem [#allocation4], %s275
          %s277 = smul.u32 16, %s28
          %s278 = smul.u32 2, %s29
          %280 = vsyncadd %s273, 0
          %s281 = smul.addr %s277, 2
          %s282 = sadd.s32 %s278, %s281
          %s283 = smul.addr %s282, 8
          %s284 = scalar_lea.hbm %s0, %s283
          %s285 = sshll.u32 %s284, 4
          %s286 = int_to_ptr.hbm [resolvable:$true] %s285
          %s287 = sshll.u32 %s276, 4
          %s288 = int_to_ptr.vmem [resolvable:$true] %s287
          %293 = dma.hbm_to_vmem [thread:$0]  %s286, 4096, %s288, %s273, 256, 256, 16
        $region44: #{tpu_custom_call.1} parent=39 // pred_fallthru
          _
      $region40: #{tpu_custom_call.1} parent=5 // pred_fallthru
        _
      %p294 = scmp.le.s32.totalorder 1, %s21
      %p295 = scmp.lt.s32.totalorder %s21, 3
      %p296 = pnand %p294, %p295
      %p297 = pneg %p296
      // Predicated region
      $region45: #{tpu_custom_call.1} parent=5 // pred_check
        _
      $region46: #{tpu_custom_call.1} parent=5 // pred_check_branch
        %299 = sbr.rel (%p296) target = $region48
      $region47: #{tpu_custom_call.1} parent=5 // pred_region
        %s300 = ssub.s32 %s21, 1
        %s301 = sand.u32 %s48, 1
        %s302 = scalar_lea.sflag [#allocation5], %s301
        %s303 = sand.u32 %s48, 1
        %s304 = smul.addr %s303, 256
        %s305 = scalar_lea.vmem [#allocation4], %s304
        // Predicated region
        $region49: #{tpu_custom_call.1} parent=47 // pred_check
          %p306 = pneg %p61
        $region50: #{tpu_custom_call.1} parent=47 // pred_check_branch
          %308 = sbr.rel (%p306) target = $region52
        $region51: #{tpu_custom_call.1} parent=47 // pred_region
          %310 = dma.done %s302, 4096
        $region52: #{tpu_custom_call.1} parent=47 // pred_fallthru
          _
        // Predicated region
        $region53: #{tpu_custom_call.1} parent=47 // pred_check
          %p311 = pneg %p87
        $region54: #{tpu_custom_call.1} parent=47 // pred_check_branch
          %313 = sbr.rel (%p311) target = $region56
        $region55: #{tpu_custom_call.1} parent=47 // pred_region
          %315 = dma.done [#allocation8], 2048
        $region56: #{tpu_custom_call.1} parent=47 // pred_fallthru
          _
        %s316 = sand.u32 %s48, 1
        %s317 = scalar_lea.sflag [#allocation5], %s316
        %s318 = sand.u32 %s48, 1
        %s319 = smul.addr %s318, 256
        %s320 = scalar_lea.vmem [#allocation4], %s319
        %p321 = pneg %p61
        %p322 = pneg %p58
        %p323 = pneg %p87
        %p324 = pneg %p84
        %p325 = pneg %p108
        %p326 = pneg %p105
        %p327 = pneg %p129
        %p328 = pneg %p126
        %p329 = pneg %p150
        %p330 = pneg %p147
        %p331 = pneg %p171
        %p332 = pneg %p168
        %p333 = pneg %p192
        %p334 = pneg %p189
        %p335 = pneg %p218
        %p336 = pneg %p215
        %s337 = sand.u32 %s205, 1
        %s338 = scalar_lea.sflag [#allocation6], %s337
        %s339 = sand.u32 %s205, 1
        %s340 = scalar_lea.vmem [#allocation9], %s339
        %s341 = smul.u32 16, %s30
        %s342 = smul.u32 2, %s31
        %s343 = smul.u32 32, %s31
        %p344 = scmp.eq.s32.totalorder %s31, 0
        // Predicated region
        $region57: #{tpu_custom_call.1} parent=47 // pred_check
          %p345 = pneg %p344
        $region58: #{tpu_custom_call.1} parent=47 // pred_check_branch
          %347 = sbr.rel (%p345) target = $region60
        $region59: #{tpu_custom_call.1} parent=47 // pred_region
          %348 = vst [vmem:[#allocation2] sm:$0xff] 0.0
          %349 = vst [vmem:[#allocation2 + $0x8] sm:$0xff] 0.0
          %350 = vst [vmem:[#allocation2 + $0x10] sm:$0xff] 0.0
          %351 = vst [vmem:[#allocation2 + $0x18] sm:$0xff] 0.0
          %352 = vst [vmem:[#allocation2 + $0x20] sm:$0xff] 0.0
          %353 = vst [vmem:[#allocation2 + $0x28] sm:$0xff] 0.0
          %354 = vst [vmem:[#allocation2 + $0x30] sm:$0xff] 0.0
          %355 = vst [vmem:[#allocation2 + $0x38] sm:$0xff] 0.0
          %356 = vst [vmem:[#allocation2 + $0x40] sm:$0xff] 0.0
          %357 = vst [vmem:[#allocation2 + $0x48] sm:$0xff] 0.0
          %358 = vst [vmem:[#allocation2 + $0x50] sm:$0xff] 0.0
          %359 = vst [vmem:[#allocation2 + $0x58] sm:$0xff] 0.0
          %360 = vst [vmem:[#allocation2 + $0x60] sm:$0xff] 0.0
          %361 = vst [vmem:[#allocation2 + $0x68] sm:$0xff] 0.0
          %362 = vst [vmem:[#allocation2 + $0x70] sm:$0xff] 0.0
          %363 = vst [vmem:[#allocation2 + $0x78] sm:$0xff] 0.0
        $region60: #{tpu_custom_call.1} parent=47 // pred_fallthru
          _
        %v364 = vld [vmem:[#allocation2] sm:$0xff]
        %v365 = vld [vmem:[#allocation2 + $0x8] sm:$0xff]
        %v366 = vld [vmem:[#allocation2 + $0x10] sm:$0xff]
        %v367 = vld [vmem:[#allocation2 + $0x18] sm:$0xff]
        %v368 = vld [vmem:[#allocation2 + $0x20] sm:$0xff]
        %v369 = vld [vmem:[#allocation2 + $0x28] sm:$0xff]
        %v370 = vld [vmem:[#allocation2 + $0x30] sm:$0xff]
        %v371 = vld [vmem:[#allocation2 + $0x38] sm:$0xff]
        %v372 = vld [vmem:[#allocation2 + $0x40] sm:$0xff]
        %v373 = vld [vmem:[#allocation2 + $0x48] sm:$0xff]
        %v374 = vld [vmem:[#allocation2 + $0x50] sm:$0xff]
        %v375 = vld [vmem:[#allocation2 + $0x58] sm:$0xff]
        %v376 = vld [vmem:[#allocation2 + $0x60] sm:$0xff]
        %v377 = vld [vmem:[#allocation2 + $0x68] sm:$0xff]
        %v378 = vld [vmem:[#allocation2 + $0x70] sm:$0xff]
        %v379 = vld [vmem:[#allocation2 + $0x78] sm:$0xff]
        %v380 = vld [vmem:[%s305] sm:$0xff]
        %v381 = vld [vmem:[%s305 + $0x8] sm:$0xff]
        %v382 = vld [vmem:[%s305 + $0x10] sm:$0xff]
        %v383 = vld [vmem:[%s305 + $0x18] sm:$0xff]
        %v384 = vld [vmem:[%s305 + $0x20] sm:$0xff]
        %v385 = vld [vmem:[%s305 + $0x28] sm:$0xff]
        %v386 = vld [vmem:[%s305 + $0x30] sm:$0xff]
        %v387 = vld [vmem:[%s305 + $0x38] sm:$0xff]
        %v388 = vld [vmem:[%s305 + $0x40] sm:$0xff]
        %v389 = vld [vmem:[%s305 + $0x48] sm:$0xff]
        %v390 = vld [vmem:[%s305 + $0x50] sm:$0xff]
        %v391 = vld [vmem:[%s305 + $0x58] sm:$0xff]
        %v392 = vld [vmem:[%s305 + $0x60] sm:$0xff]
        %v393 = vld [vmem:[%s305 + $0x68] sm:$0xff]
        %v394 = vld [vmem:[%s305 + $0x70] sm:$0xff]
        %v395 = vld [vmem:[%s305 + $0x78] sm:$0xff]
        %v396 = vld [vmem:[%s305 + $0x80] sm:$0xff]
        %v397 = vld [vmem:[%s305 + $0x88] sm:$0xff]
        %v398 = vld [vmem:[%s305 + $0x90] sm:$0xff]
        %v399 = vld [vmem:[%s305 + $0x98] sm:$0xff]
        %v400 = vld [vmem:[%s305 + $0xa0] sm:$0xff]
        %v401 = vld [vmem:[%s305 + $0xa8] sm:$0xff]
        %v402 = vld [vmem:[%s305 + $0xb0] sm:$0xff]
        %v403 = vld [vmem:[%s305 + $0xb8] sm:$0xff]
        %v404 = vld [vmem:[%s305 + $0xc0] sm:$0xff]
        %v405 = vld [vmem:[%s305 + $0xc8] sm:$0xff]
        %v406 = vld [vmem:[%s305 + $0xd0] sm:$0xff]
        %v407 = vld [vmem:[%s305 + $0xd8] sm:$0xff]
        %v408 = vld [vmem:[%s305 + $0xe0] sm:$0xff]
        %v409 = vld [vmem:[%s305 + $0xe8] sm:$0xff]
        %v410 = vld [vmem:[%s305 + $0xf0] sm:$0xff]
        %v411 = vld [vmem:[%s305 + $0xf8] sm:$0xff]
        %v412 = vpack.c.bf16 %v382, %v380
        %v413 = vpack.c.bf16 %v383, %v381
        %v414 = vpack.c.bf16 %v386, %v384
        %v415 = vpack.c.bf16 %v387, %v385
        %v416 = vpack.c.bf16 %v390, %v388
        %v417 = vpack.c.bf16 %v391, %v389
        %v418 = vpack.c.bf16 %v394, %v392
        %v419 = vpack.c.bf16 %v395, %v393
        %v420 = vpack.c.bf16 %v398, %v396
        %v421 = vpack.c.bf16 %v399, %v397
        %v422 = vpack.c.bf16 %v402, %v400
        %v423 = vpack.c.bf16 %v403, %v401
        %v424 = vpack.c.bf16 %v406, %v404
        %v425 = vpack.c.bf16 %v407, %v405
        %v426 = vpack.c.bf16 %v410, %v408
        %v427 = vpack.c.bf16 %v411, %v409
        %v428 = vld [vmem:[#allocation7] sm:$0xf]
        %v429 = vld [vmem:[#allocation7 + $0x4] sm:$0xf]
        %v430 = vld [vmem:[#allocation7 + $0x8] sm:$0xf]
        %v431 = vld [vmem:[#allocation7 + $0xc] sm:$0xf]
        %v432 = vld [vmem:[#allocation7 + $0x10] sm:$0xf]
        %v433 = vld [vmem:[#allocation7 + $0x14] sm:$0xf]
        %v434 = vld [vmem:[#allocation7 + $0x18] sm:$0xf]
        %v435 = vld [vmem:[#allocation7 + $0x1c] sm:$0xf]
        %v436 = vld [vmem:[#allocation7 + $0x20] sm:$0xf]
        %v437 = vld [vmem:[#allocation7 + $0x24] sm:$0xf]
        %v438 = vld [vmem:[#allocation7 + $0x28] sm:$0xf]
        %v439 = vld [vmem:[#allocation7 + $0x2c] sm:$0xf]
        %v440 = vld [vmem:[#allocation7 + $0x30] sm:$0xf]
        %v441 = vld [vmem:[#allocation7 + $0x34] sm:$0xf]
        %v442 = vld [vmem:[#allocation7 + $0x38] sm:$0xf]
        %v443 = vld [vmem:[#allocation7 + $0x3c] sm:$0xf]
        %v444 = vld [vmem:[#allocation7 + $0x40] sm:$0xf]
        %v445 = vld [vmem:[#allocation7 + $0x44] sm:$0xf]
        %v446 = vld [vmem:[#allocation7 + $0x48] sm:$0xf]
        %v447 = vld [vmem:[#allocation7 + $0x4c] sm:$0xf]
        %v448 = vld [vmem:[#allocation7 + $0x50] sm:$0xf]
        %v449 = vld [vmem:[#allocation7 + $0x54] sm:$0xf]
        %v450 = vld [vmem:[#allocation7 + $0x58] sm:$0xf]
        %v451 = vld [vmem:[#allocation7 + $0x5c] sm:$0xf]
        %v452 = vld [vmem:[#allocation7 + $0x60] sm:$0xf]
        %v453 = vld [vmem:[#allocation7 + $0x64] sm:$0xf]
        %v454 = vld [vmem:[#allocation7 + $0x68] sm:$0xf]
        %v455 = vld [vmem:[#allocation7 + $0x6c] sm:$0xf]
        %v456 = vld [vmem:[#allocation7 + $0x70] sm:$0xf]
        %v457 = vld [vmem:[#allocation7 + $0x74] sm:$0xf]
        %v458 = vld [vmem:[#allocation7 + $0x78] sm:$0xf]
        %v459 = vld [vmem:[#allocation7 + $0x7c] sm:$0xf]
        %v492 = vunpack.c.l.b16 %v428
        %v493 = vunpack.c.l.b16 %v429
        %v494 = vunpack.c.l.b16 %v430
        %v495 = vunpack.c.l.b16 %v431
        %v496 = vunpack.c.l.b16 %v432
        %v497 = vunpack.c.l.b16 %v433
        %v498 = vunpack.c.l.b16 %v434
        %v499 = vunpack.c.l.b16 %v435
        %v500 = vunpack.c.l.b16 %v436
        %v501 = vunpack.c.l.b16 %v437
        %v502 = vunpack.c.l.b16 %v438
        %v503 = vunpack.c.l.b16 %v439
        %v504 = vunpack.c.l.b16 %v440
        %v505 = vunpack.c.l.b16 %v441
        %v506 = vunpack.c.l.b16 %v442
        %v507 = vunpack.c.l.b16 %v443
        %v508 = vunpack.c.l.b16 %v444
        %v509 = vunpack.c.l.b16 %v445
        %v510 = vunpack.c.l.b16 %v446
        %v511 = vunpack.c.l.b16 %v447
        %v512 = vunpack.c.l.b16 %v448
        %v513 = vunpack.c.l.b16 %v449
        %v514 = vunpack.c.l.b16 %v450
        %v515 = vunpack.c.l.b16 %v451
        %v516 = vunpack.c.l.b16 %v452
        %v517 = vunpack.c.l.b16 %v453
        %v518 = vunpack.c.l.b16 %v454
        %v519 = vunpack.c.l.b16 %v455
        %v520 = vunpack.c.l.b16 %v456
        %v521 = vunpack.c.l.b16 %v457
        %v522 = vunpack.c.l.b16 %v458
        %v523 = vunpack.c.l.b16 %v459
        %v524 = vpack.c.b16 %v493, %v492
        %v525 = vpack.c.b16 %v495, %v494
        %v526 = vpack.c.b16 %v497, %v496
        %v527 = vpack.c.b16 %v499, %v498
        %v528 = vpack.c.b16 %v501, %v500
        %v529 = vpack.c.b16 %v503, %v502
        %v530 = vpack.c.b16 %v505, %v504
        %v531 = vpack.c.b16 %v507, %v506
        %v532 = vpack.c.b16 %v509, %v508
        %v533 = vpack.c.b16 %v511, %v510
        %v534 = vpack.c.b16 %v513, %v512
        %v535 = vpack.c.b16 %v515, %v514
        %v536 = vpack.c.b16 %v517, %v516
        %v537 = vpack.c.b16 %v519, %v518
        %v538 = vpack.c.b16 %v521, %v520
        %v539 = vpack.c.b16 %v523, %v522
        %556 = vmatpush.bf16.msra.mxu0 %v531
        %557 = vmatpush.bf16.msra.mxu0 %v530
        %558 = vmatpush.bf16.msra.mxu0 %v529
        %559 = vmatpush.bf16.msra.mxu0 %v528
        %560 = vmatpush.bf16.msra.mxu0 %v527
        %561 = vmatpush.bf16.msra.mxu0 %v526
        %562 = vmatpush.bf16.msra.mxu0 %v525
        %563 = vmatpush.bf16.msra.mxu0 %v524
        %564 = vmatmul.bf16.gmra.mxu0 %v412
        %v565 = vpop.f32.mrf.mxu0
        %v566 = vadd.f32 0.0, %v565
        %v567 = vpop.f32.mrf.mxu0
        %v568 = vadd.f32 0.0, %v567
        %569 = vmatmul.bf16.gmra.mxu0 %v414
        %v570 = vpop.f32.mrf.mxu0
        %v571 = vadd.f32 0.0, %v570
        %v572 = vpop.f32.mrf.mxu0
        %v573 = vadd.f32 0.0, %v572
        %574 = vmatmul.bf16.gmra.mxu0 %v416
        %v575 = vpop.f32.mrf.mxu0
        %v576 = vadd.f32 0.0, %v575
        %v577 = vpop.f32.mrf.mxu0
        %v578 = vadd.f32 0.0, %v577
        %579 = vmatmul.bf16.gmra.mxu0 %v418
        %v580 = vpop.f32.mrf.mxu0
        %v581 = vadd.f32 0.0, %v580
        %v582 = vpop.f32.mrf.mxu0
        %v583 = vadd.f32 0.0, %v582
        %584 = vmatmul.bf16.gmra.mxu0 %v420
        %v585 = vpop.f32.mrf.mxu0
        %v586 = vadd.f32 0.0, %v585
        %v587 = vpop.f32.mrf.mxu0
        %v588 = vadd.f32 0.0, %v587
        %589 = vmatmul.bf16.gmra.mxu0 %v422
        %v590 = vpop.f32.mrf.mxu0
        %v591 = vadd.f32 0.0, %v590
        %v592 = vpop.f32.mrf.mxu0
        %v593 = vadd.f32 0.0, %v592
        %594 = vmatmul.bf16.gmra.mxu0 %v424
        %v595 = vpop.f32.mrf.mxu0
        %v596 = vadd.f32 0.0, %v595
        %v597 = vpop.f32.mrf.mxu0
        %v598 = vadd.f32 0.0, %v597
        %599 = vmatmul.bf16.gmra.mxu0 %v426
        %v600 = vpop.f32.mrf.mxu0
        %v601 = vadd.f32 0.0, %v600
        %v602 = vpop.f32.mrf.mxu0
        %v603 = vadd.f32 0.0, %v602
        %604 = vdwg.mxu0
        %605 = vmatpush.bf16.msra.mxu0 %v539
        %606 = vmatpush.bf16.msra.mxu0 %v538
        %607 = vmatpush.bf16.msra.mxu0 %v537
        %608 = vmatpush.bf16.msra.mxu0 %v536
        %609 = vmatpush.bf16.msra.mxu0 %v535
        %610 = vmatpush.bf16.msra.mxu0 %v534
        %611 = vmatpush.bf16.msra.mxu0 %v533
        %612 = vmatpush.bf16.msra.mxu0 %v532
        %613 = vmatmul.bf16.gmra.mxu0 %v413
        %v614 = vpop.f32.mrf.mxu0
        %v615 = vadd.f32 %v566, %v614
        %v616 = vpop.f32.mrf.mxu0
        %v617 = vadd.f32 %v568, %v616
        %618 = vmatmul.bf16.gmra.mxu0 %v415
        %v619 = vpop.f32.mrf.mxu0
        %v620 = vadd.f32 %v571, %v619
        %v621 = vpop.f32.mrf.mxu0
        %v622 = vadd.f32 %v573, %v621
        %623 = vmatmul.bf16.gmra.mxu0 %v417
        %v624 = vpop.f32.mrf.mxu0
        %v625 = vadd.f32 %v576, %v624
        %v626 = vpop.f32.mrf.mxu0
        %v627 = vadd.f32 %v578, %v626
        %628 = vmatmul.bf16.gmra.mxu0 %v419
        %v629 = vpop.f32.mrf.mxu0
        %v630 = vadd.f32 %v581, %v629
        %v631 = vpop.f32.mrf.mxu0
        %v632 = vadd.f32 %v583, %v631
        %633 = vmatmul.bf16.gmra.mxu0 %v421
        %v634 = vpop.f32.mrf.mxu0
        %v635 = vadd.f32 %v586, %v634
        %v636 = vpop.f32.mrf.mxu0
        %v637 = vadd.f32 %v588, %v636
        %638 = vmatmul.bf16.gmra.mxu0 %v423
        %v639 = vpop.f32.mrf.mxu0
        %v640 = vadd.f32 %v591, %v639
        %v641 = vpop.f32.mrf.mxu0
        %v642 = vadd.f32 %v593, %v641
        %643 = vmatmul.bf16.gmra.mxu0 %v425
        %v644 = vpop.f32.mrf.mxu0
        %v645 = vadd.f32 %v596, %v644
        %v646 = vpop.f32.mrf.mxu0
        %v647 = vadd.f32 %v598, %v646
        %648 = vmatmul.bf16.gmra.mxu0 %v427
        %v649 = vpop.f32.mrf.mxu0
        %v650 = vadd.f32 %v601, %v649
        %v651 = vpop.f32.mrf.mxu0
        %v652 = vadd.f32 %v603, %v651
        %653 = vdwg.mxu0
        %v654 = vadd.f32 %v364, %v615
        %v655 = vadd.f32 %v365, %v617
        %v656 = vadd.f32 %v366, %v620
        %v657 = vadd.f32 %v367, %v622
        %v658 = vadd.f32 %v368, %v625
        %v659 = vadd.f32 %v369, %v627
        %v660 = vadd.f32 %v370, %v630
        %v661 = vadd.f32 %v371, %v632
        %v662 = vadd.f32 %v372, %v635
        %v663 = vadd.f32 %v373, %v637
        %v664 = vadd.f32 %v374, %v640
        %v665 = vadd.f32 %v375, %v642
        %v666 = vadd.f32 %v376, %v645
        %v667 = vadd.f32 %v377, %v647
        %v668 = vadd.f32 %v378, %v650
        %v669 = vadd.f32 %v379, %v652
        %670 = vst [vmem:[#allocation2] sm:$0xff] %v654
        %671 = vst [vmem:[#allocation2 + $0x8] sm:$0xff] %v655
        %672 = vst [vmem:[#allocation2 + $0x10] sm:$0xff] %v656
        %673 = vst [vmem:[#allocation2 + $0x18] sm:$0xff] %v657
        %674 = vst [vmem:[#allocation2 + $0x20] sm:$0xff] %v658
        %675 = vst [vmem:[#allocation2 + $0x28] sm:$0xff] %v659
        %676 = vst [vmem:[#allocation2 + $0x30] sm:$0xff] %v660
        %677 = vst [vmem:[#allocation2 + $0x38] sm:$0xff] %v661
        %678 = vst [vmem:[#allocation2 + $0x40] sm:$0xff] %v662
        %679 = vst [vmem:[#allocation2 + $0x48] sm:$0xff] %v663
        %680 = vst [vmem:[#allocation2 + $0x50] sm:$0xff] %v664
        %681 = vst [vmem:[#allocation2 + $0x58] sm:$0xff] %v665
        %682 = vst [vmem:[#allocation2 + $0x60] sm:$0xff] %v666
        %683 = vst [vmem:[#allocation2 + $0x68] sm:$0xff] %v667
        %684 = vst [vmem:[#allocation2 + $0x70] sm:$0xff] %v668
        %685 = vst [vmem:[#allocation2 + $0x78] sm:$0xff] %v669
        // Predicated region
        $region61: #{tpu_custom_call.1} parent=47 // pred_check
          %p686 = pneg %p344
        $region62: #{tpu_custom_call.1} parent=47 // pred_check_branch
          %688 = sbr.rel (%p686) target = $region64
        $region63: #{tpu_custom_call.1} parent=47 // pred_region
          %v689 = vld [vmem:[#allocation2] sm:$0xff]
          %v690 = vld [vmem:[#allocation2 + $0x8] sm:$0xff]
          %v691 = vld [vmem:[#allocation2 + $0x10] sm:$0xff]
          %v692 = vld [vmem:[#allocation2 + $0x18] sm:$0xff]
          %v693 = vld [vmem:[#allocation2 + $0x20] sm:$0xff]
          %v694 = vld [vmem:[#allocation2 + $0x28] sm:$0xff]
          %v695 = vld [vmem:[#allocation2 + $0x30] sm:$0xff]
          %v696 = vld [vmem:[#allocation2 + $0x38] sm:$0xff]
          %v697 = vld [vmem:[#allocation2 + $0x40] sm:$0xff]
          %v698 = vld [vmem:[#allocation2 + $0x48] sm:$0xff]
          %v699 = vld [vmem:[#allocation2 + $0x50] sm:$0xff]
          %v700 = vld [vmem:[#allocation2 + $0x58] sm:$0xff]
          %v701 = vld [vmem:[#allocation2 + $0x60] sm:$0xff]
          %v702 = vld [vmem:[#allocation2 + $0x68] sm:$0xff]
          %v703 = vld [vmem:[#allocation2 + $0x70] sm:$0xff]
          %v704 = vld [vmem:[#allocation2 + $0x78] sm:$0xff]
          %v705 = vld [vmem:[%s2] sm:$0x1]
          %v707 = vperm.slane %v705, 0
          %v709 = vadd.f32 %v689, %v707
          %v710 = vadd.f32 %v690, %v707
          %v711 = vadd.f32 %v691, %v707
          %v712 = vadd.f32 %v692, %v707
          %v713 = vadd.f32 %v693, %v707
          %v714 = vadd.f32 %v694, %v707
          %v715 = vadd.f32 %v695, %v707
          %v716 = vadd.f32 %v696, %v707
          %v717 = vadd.f32 %v697, %v707
          %v718 = vadd.f32 %v698, %v707
          %v719 = vadd.f32 %v699, %v707
          %v720 = vadd.f32 %v700, %v707
          %v721 = vadd.f32 %v701, %v707
          %v722 = vadd.f32 %v702, %v707
          %v723 = vadd.f32 %v703, %v707
          %v724 = vadd.f32 %v704, %v707
          %v725 = vmax.f32 %v709, 0.0
          %v726 = vmax.f32 %v710, 0.0
          %v727 = vmax.f32 %v711, 0.0
          %v728 = vmax.f32 %v712, 0.0
          %v729 = vmax.f32 %v713, 0.0
          %v730 = vmax.f32 %v714, 0.0
          %v731 = vmax.f32 %v715, 0.0
          %v732 = vmax.f32 %v716, 0.0
          %v733 = vmax.f32 %v717, 0.0
          %v734 = vmax.f32 %v718, 0.0
          %v735 = vmax.f32 %v719, 0.0
          %v736 = vmax.f32 %v720, 0.0
          %v737 = vmax.f32 %v721, 0.0
          %v738 = vmax.f32 %v722, 0.0
          %v739 = vmax.f32 %v723, 0.0
          %v740 = vmax.f32 %v724, 0.0
          %v741 = vpack.c.bf16 %v726, %v725
          %v742 = vpack.c.bf16 %v728, %v727
          %v743 = vpack.c.bf16 %v730, %v729
          %v744 = vpack.c.bf16 %v732, %v731
          %v745 = vpack.c.bf16 %v734, %v733
          %v746 = vpack.c.bf16 %v736, %v735
          %v747 = vpack.c.bf16 %v738, %v737
          %v748 = vpack.c.bf16 %v740, %v739
          %v749 = vld [vmem:[%s3] sm:$0xf]
          %v750 = vld [vmem:[%s3 + $0x4] sm:$0xf]
          %v751 = vld [vmem:[%s3 + $0x8] sm:$0xf]
          %v752 = vld [vmem:[%s3 + $0xc] sm:$0xf]
          %v753 = vld [vmem:[%s3 + $0x10] sm:$0xf]
          %v754 = vld [vmem:[%s3 + $0x14] sm:$0xf]
          %v755 = vld [vmem:[%s3 + $0x18] sm:$0xf]
          %v756 = vld [vmem:[%s3 + $0x1c] sm:$0xf]
          %v757 = vld [vmem:[%s3 + $0x20] sm:$0xf]
          %v758 = vld [vmem:[%s3 + $0x24] sm:$0xf]
          %v759 = vld [vmem:[%s3 + $0x28] sm:$0xf]
          %v760 = vld [vmem:[%s3 + $0x2c] sm:$0xf]
          %v761 = vld [vmem:[%s3 + $0x30] sm:$0xf]
          %v762 = vld [vmem:[%s3 + $0x34] sm:$0xf]
          %v763 = vld [vmem:[%s3 + $0x38] sm:$0xf]
          %v764 = vld [vmem:[%s3 + $0x3c] sm:$0xf]
          %v765 = vld [vmem:[%s4] sm:$0x1]
          %v767 = vperm.slane %v765, 0
          %v785 = vunpack.c.l.b16 %v749
          %v786 = vunpack.c.l.b16 %v750
          %v787 = vunpack.c.l.b16 %v751
          %v788 = vunpack.c.l.b16 %v752
          %v789 = vunpack.c.l.b16 %v753
          %v790 = vunpack.c.l.b16 %v754
          %v791 = vunpack.c.l.b16 %v755
          %v792 = vunpack.c.l.b16 %v756
          %v793 = vunpack.c.l.b16 %v757
          %v794 = vunpack.c.l.b16 %v758
          %v795 = vunpack.c.l.b16 %v759
          %v796 = vunpack.c.l.b16 %v760
          %v797 = vunpack.c.l.b16 %v761
          %v798 = vunpack.c.l.b16 %v762
          %v799 = vunpack.c.l.b16 %v763
          %v800 = vunpack.c.l.b16 %v764
          %v801 = vpack.c.b16 %v786, %v785
          %v802 = vpack.c.b16 %v788, %v787
          %v803 = vpack.c.b16 %v790, %v789
          %v804 = vpack.c.b16 %v792, %v791
          %v805 = vpack.c.b16 %v794, %v793
          %v806 = vpack.c.b16 %v796, %v795
          %v807 = vpack.c.b16 %v798, %v797
          %v808 = vpack.c.b16 %v800, %v799
          %817 = vmatpush.bf16.msra.mxu0 %v808
          %818 = vmatpush.bf16.msra.mxu0 %v807
          %819 = vmatpush.bf16.msra.mxu0 %v806
          %820 = vmatpush.bf16.msra.mxu0 %v805
          %821 = vmatpush.bf16.msra.mxu0 %v804
          %822 = vmatpush.bf16.msra.mxu0 %v803
          %823 = vmatpush.bf16.msra.mxu0 %v802
          %824 = vmatpush.bf16.msra.mxu0 %v801
          %825 = vmatmul.bf16.gmra.mxu0 %v741
          %v826 = vpop.f32.mrf.mxu0
          %v827 = vadd.f32 %v767, %v826
          %v828 = vpop.f32.mrf.mxu0
          %v829 = vadd.f32 %v767, %v828
          %830 = vmatmul.bf16.gmra.mxu0 %v742
          %v831 = vpop.f32.mrf.mxu0
          %v832 = vadd.f32 %v767, %v831
          %v833 = vpop.f32.mrf.mxu0
          %v834 = vadd.f32 %v767, %v833
          %835 = vmatmul.bf16.gmra.mxu0 %v743
          %v836 = vpop.f32.mrf.mxu0
          %v837 = vadd.f32 %v767, %v836
          %v838 = vpop.f32.mrf.mxu0
          %v839 = vadd.f32 %v767, %v838
          %840 = vmatmul.bf16.gmra.mxu0 %v744
          %v841 = vpop.f32.mrf.mxu0
          %v842 = vadd.f32 %v767, %v841
          %v843 = vpop.f32.mrf.mxu0
          %v844 = vadd.f32 %v767, %v843
          %845 = vmatmul.bf16.gmra.mxu0 %v745
          %v846 = vpop.f32.mrf.mxu0
          %v847 = vadd.f32 %v767, %v846
          %v848 = vpop.f32.mrf.mxu0
          %v849 = vadd.f32 %v767, %v848
          %850 = vmatmul.bf16.gmra.mxu0 %v746
          %v851 = vpop.f32.mrf.mxu0
          %v852 = vadd.f32 %v767, %v851
          %v853 = vpop.f32.mrf.mxu0
          %v854 = vadd.f32 %v767, %v853
          %855 = vmatmul.bf16.gmra.mxu0 %v747
          %v856 = vpop.f32.mrf.mxu0
          %v857 = vadd.f32 %v767, %v856
          %v858 = vpop.f32.mrf.mxu0
          %v859 = vadd.f32 %v767, %v858
          %860 = vmatmul.bf16.gmra.mxu0 %v748
          %v861 = vpop.f32.mrf.mxu0
          %v862 = vadd.f32 %v767, %v861
          %v863 = vpop.f32.mrf.mxu0
          %v864 = vadd.f32 %v767, %v863
          %865 = vdwg.mxu0
          %v866 = vmax.f32 %v827, 0.0
          %v867 = vmax.f32 %v829, 0.0
          %v868 = vmax.f32 %v832, 0.0
          %v869 = vmax.f32 %v834, 0.0
          %v870 = vmax.f32 %v837, 0.0
          %v871 = vmax.f32 %v839, 0.0
          %v872 = vmax.f32 %v842, 0.0
          %v873 = vmax.f32 %v844, 0.0
          %v874 = vmax.f32 %v847, 0.0
          %v875 = vmax.f32 %v849, 0.0
          %v876 = vmax.f32 %v852, 0.0
          %v877 = vmax.f32 %v854, 0.0
          %v878 = vmax.f32 %v857, 0.0
          %v879 = vmax.f32 %v859, 0.0
          %v880 = vmax.f32 %v862, 0.0
          %v881 = vmax.f32 %v864, 0.0
          %v882 = vld [vmem:[%s5] sm:$0x1]
          %s883 = sld [smem:[#allocation3]]
          %v884 = vstv %s883
          %vm885 = vcmask 523264
          %v887 = vsel %vm885, %v882, 0
          %v890 = vsel %vm885, %v866, 0
          %v893 = vsel %vm885, %v867, 0
          %v896 = vsel %vm885, %v868, 0
          %v899 = vsel %vm885, %v869, 0
          %v902 = vsel %vm885, %v870, 0
          %v905 = vsel %vm885, %v871, 0
          %v908 = vsel %vm885, %v872, 0
          %v911 = vsel %vm885, %v873, 0
          %v914 = vsel %vm885, %v874, 0
          %v917 = vsel %vm885, %v875, 0
          %v920 = vsel %vm885, %v876, 0
          %v923 = vsel %vm885, %v877, 0
          %v926 = vsel %vm885, %v878, 0
          %v929 = vsel %vm885, %v879, 0
          %v932 = vsel %vm885, %v880, 0
          %v935 = vsel %vm885, %v881, 0
          %937 = vmatpush.xpose.msra.mxu0 %v935
          %938 = vmatpush.xpose.msra.mxu0 %v932
          %939 = vmatpush.xpose.msra.mxu0 %v929
          %940 = vmatpush.xpose.msra.mxu0 %v926
          %941 = vmatpush.xpose.msra.mxu0 %v923
          %942 = vmatpush.xpose.msra.mxu0 %v920
          %943 = vmatpush.xpose.msra.mxu0 %v917
          %944 = vmatpush.xpose.msra.mxu0 %v914
          %945 = vmatpush.xpose.msra.mxu0 %v911
          %946 = vmatpush.xpose.msra.mxu0 %v908
          %947 = vmatpush.xpose.msra.mxu0 %v905
          %948 = vmatpush.xpose.msra.mxu0 %v902
          %949 = vmatpush.xpose.msra.mxu0 %v899
          %950 = vmatpush.xpose.msra.mxu0 %v896
          %951 = vmatpush.xpose.msra.mxu0 %v893
          %952 = vmatpush.xpose.msra.mxu0 %v890
          %953 = vmatmul.f32.gmra.mxu0 %v887
          %v954 = vpop.f32.mrf.mxu0
          %v955 = vadd.f32 %v884, %v954
          %956 = vdwg.mxu0
          %v957 = vxor.u32 %v955, 2147483648
          %v958 = vmul.f32 %v957, 1.442695
          %v959 = vpow.pop %v958
          %v960 = vadd.f32 %v959, 1.0
          %v961 = vrcp.pop %v960
          %v962 = vmul.f32 %v960, %v961
          %v963 = vsub.f32 1.0, %v962
          %v964 = vmul.f32 %v961, %v963
          %v965 = vadd.f32 %v961, %v964
          %vm966 = vweird.f32 %v960
          %vm967 = vweird.f32 %v961
          %vm968 = vmor %vm966, %vm967
          %v969 = vsel %vm968, %v961, %v965
          %v970 = vand.u32 2147483647, %v960
          %vm971 = vcmp.eq.f32.partialorder %v970, 8.507059e+37
          %v972 = vand.u32 %v960, 2147483648
          %v973 = vor.u32 1.1754944e-38, %v972
          %v974 = vsel %vm971, %v973, %v969
          %v975 = vmul.f32 1.0, %v974
          %976 = vst [vmem:[%s340] sm:$0x1] %v975
        $region64: #{tpu_custom_call.1} parent=47 // pred_fallthru
          _
        %s977 = sand.u32 %s205, 1
        %s978 = scalar_lea.sflag [#allocation6], %s977
        %s979 = sand.u32 %s205, 1
        %s980 = scalar_lea.vmem [#allocation9], %s979
        // Predicated region
        $region65: #{tpu_custom_call.1} parent=47 // pred_check
          %p981 = pneg %p215
        $region66: #{tpu_custom_call.1} parent=47 // pred_check_branch
          %983 = sbr.rel (%p981) target = $region68
        $region67: #{tpu_custom_call.1} parent=47 // pred_region
          %985 = vsyncadd %s978, 0
          %s986 = scalar_lea.hbm %s7, %s30
          %s988 = sshll.u32 %s980, 4
          %s989 = int_to_ptr.vmem [resolvable:$true] %s988
          %s990 = sshll.u32 %s986, 4
          %s991 = int_to_ptr.hbm [resolvable:$true] %s990
          %993 = dma.vmem_to_hbm [thread:$0]  %s989, 16, %s991, %s978
        $region68: #{tpu_custom_call.1} parent=47 // pred_fallthru
          _
      $region48: #{tpu_custom_call.1} parent=5 // pred_fallthru
        _
      %p994 = scmp.le.s32.totalorder 2, %s21
      // Predicated region
      $region69: #{tpu_custom_call.1} parent=5 // pred_check
        %p995 = pneg %p994
      $region70: #{tpu_custom_call.1} parent=5 // pred_check_branch
        %997 = sbr.rel (%p995) target = $region72
      $region71: #{tpu_custom_call.1} parent=5 // pred_region
        %s998 = ssub.s32 %s21, 2
        // Predicated region
        $region73: #{tpu_custom_call.1} parent=71 // pred_check
          %p999 = pneg %p221
        $region74: #{tpu_custom_call.1} parent=71 // pred_check_branch
          %1001 = sbr.rel (%p999) target = $region76
        $region75: #{tpu_custom_call.1} parent=71 // pred_region
          %s1002 = sand.u32 %s206, 1
          %s1003 = scalar_lea.sflag [#allocation6], %s1002
          %s1004 = sand.u32 %s206, 1
          %s1005 = scalar_lea.vmem [#allocation9], %s1004
          %1007 = dma.done %s1003, 16
        $region76: #{tpu_custom_call.1} parent=71 // pred_fallthru
          _
      $region72: #{tpu_custom_call.1} parent=5 // pred_fallthru
        _
    $region6: #{tpu_custom_call.1} parent=1 // loop_footer
      %s25 = sadd.s32 1, %s21
    $region7: #{tpu_custom_call.1} parent=1 // loop_footer_branch
      %20 = sbr.rel target = $region3
    $region8: #{tpu_custom_call.1} parent=1 // loop_exit
      _
    %1008 = vsyncpa [#allocation5], 1
    %s1009 = scalar_lea.sflag [#allocation5], 1
    %1010 = vsyncpa %s1009, 1
    %1011 = vsyncpa [#allocation8], 1
    %1012 = vsyncpa [#allocation6], 1
    %s1013 = scalar_lea.sflag [#allocation6], 1
    %1014 = vsyncpa %s1013, 1

</llo_original>
